<compile_context>
chip_gen: v6e
topology: v6e:2x2x1
jax: 0.10.0
libtpu: 0.0.40
codegen_flags: <defaults>
</compile_context>

<pallas_src>
import jax
import jax.numpy as jnp
from jax.experimental import pallas as pl
from jax.experimental.pallas import tpu as pltpu


# ----------------------------- kernels ---------------------------------------


def sum_vector_kernel_t(prods_t_ref, w_t_ref, out_t_ref):
    """Transposed small-S path.

    prods_t_ref: (K, TB)  log-prob children, batch on the lane axis.
    w_t_ref:     (S, K)   softmax(params, axis=0).T  (precomputed in wrapper).
    out_t_ref:   (S, TB)  log-domain sum-node activations, transposed.
    """
    prods_t = prods_t_ref[...]                                 # (K, TB)
    m = jnp.max(prods_t, axis=0, keepdims=True)                # (1, TB)
    # Guard all -inf columns: reference logsumexp returns -inf, not NaN.
    m_safe = jnp.where(jnp.isfinite(m), m, 0.0)
    e = jnp.exp(prods_t - m_safe)                              # (K, TB), in [0, 1]

    # K-reduction on the MXU.  HIGHEST keeps the f32 result within 1e-5 of the
    # reference; do NOT cast e/w to bf16 (would break the tolerance).
    acc = jnp.dot(
        w_t_ref[...], e,
        preferred_element_type=jnp.float32,
        precision=jax.lax.Precision.HIGHEST,
    )                                                          # (S, TB)

    out_t_ref[...] = (m + jnp.log(acc)).astype(out_t_ref.dtype)


def sum_vector_kernel_direct(prods_ref, w_ref, out_ref):
    """Direct large-S path.

    prods_ref: (TB, K) log-prob children.
    w_ref:     (K, S)  softmax(params, axis=0) (precomputed in wrapper).
    out_ref:   (TB, S) log-domain sum-node activations (unpadded).
    """
    prods = prods_ref[...]                                     # (TB, K)
    m = jnp.max(prods, axis=1, keepdims=True)                  # (TB, 1)
    m_safe = jnp.where(jnp.isfinite(m), m, 0.0)
    e = jnp.exp(prods - m_safe)                                # (TB, K)

    acc = jnp.dot(
        e, w_ref[...],
        preferred_element_type=jnp.float32,
        precision=jax.lax.Precision.HIGHEST,
    )                                                          # (TB, S)

    out_ref[...] = (m + jnp.log(acc)).astype(out_ref.dtype)


# ----------------------------- wrapper ----------------------------------------


def _pick_batch_tile(batch, align):
    """Large `align`-aligned batch tile, no divisibility requirement (grid uses
    pl.cdiv; Pallas masks the partial last block).  Capped so the grid has at
    least 2 steps when the batch is big enough, which lets the "parallel" axis
    shard across both TensorCores on v7x; the extra grid step is ~0.35 us on
    single-TC chips.  VMEM is nowhere near binding at TB<=1024 for these shapes.
    """
    TB_MAX = 1024
    if batch <= align:
        return batch                       # single full-extent block (always legal)
    half = (batch // 2) // align * align   # >= 2 grid steps when possible
    return min(TB_MAX, max(align, half))


def sum_vector_forward(inputs, params):
    """SumVector forward (normalized_sums=True, linear_sum_weights=False).

    inputs: list/tuple of (B, K_i) log-prob arrays (child product vectors), or a
            single pre-concatenated (B, K) array.
    params: (K, S) raw sum parameters.
    Returns (B, S) log-domain sum-node activations.
    """
    if isinstance(inputs, (list, tuple)):
        prods = jnp.concatenate(inputs, axis=1)   # torch.cat(inputs, 1) — plain-JAX glue
    else:
        prods = inputs
    prods = prods.astype(jnp.float32)
    params = params.astype(jnp.float32)

    B, K = prods.shape
    K2, S = params.shape
    assert K == K2

    # Normalized sum weights in the linear domain, computed ONCE outside the grid.
    w = jax.nn.softmax(params, axis=0)            # (K, S)

    if S <= 64:
        # Transposed formulation: batch on the lane axis, output exactly (S, B).
        prods_t = prods.T                          # (K, B)
        w_t = w.T                                  # (S, K)
        TB = _pick_batch_tile(B, align=128)        # lane-aligned (or TB == B)
        grid = (pl.cdiv(B, TB),)

        out_t = pl.pallas_call(
            sum_vector_kernel_t,
            out_shape=jax.ShapeDtypeStruct((S, B), jnp.float32),
            grid=grid,
            in_specs=[
                pl.BlockSpec((K, TB), lambda i: (0, i)),   # batch tile (lanes)
                pl.BlockSpec((S, K), lambda i: (0, 0)),    # weights resident across steps
            ],
            out_specs=pl.BlockSpec((S, TB), lambda i: (0, i)),
            compiler_params=pltpu.CompilerParams(
                dimension_semantics=("parallel",),         # shards batch tiles across TCs (v7x)
            ),
        )(prods_t, w_t)
        return out_t.T                              # tiny (S, B) -> (B, S)

    # Direct formulation for large S: unpadded output, no post-slice.
    TB = _pick_batch_tile(B, align=8)
    grid = (pl.cdiv(B, TB),)

    out = pl.pallas_call(
        sum_vector_kernel_direct,
        out_shape=jax.ShapeDtypeStruct((B, S), jnp.float32),
        grid=grid,
        in_specs=[
            pl.BlockSpec((TB, K), lambda i: (i, 0)),       # batch tile
            pl.BlockSpec((K, S), lambda i: (0, 0)),        # weights resident across steps
        ],
        out_specs=pl.BlockSpec((TB, S), lambda i: (i, 0)),
        compiler_params=pltpu.CompilerParams(
            dimension_semantics=("parallel",),
        ),
    )(prods, w)
    return out


def sum_vector_reference(prods, params):
    log_w = jax.nn.log_softmax(params, axis=0)
    child_values = prods[:, :, None] + log_w[None, :, :]
    return jax.nn.logsumexp(child_values, axis=1)


if __name__ == "__main__":
    key = jax.random.PRNGKey(0)
    k1, k2, k3, k4, k5, k6 = jax.random.split(key, 6)

    # Small config matching the module: two 16-wide child product vectors -> K = 32.
    batch = 8
    prod_sizes = (16, 16)
    num_inputs = sum(prod_sizes)      # K = 32
    num_sums = 16                     # S

    # Child product-node outputs are log-probabilities (negative values).
    inputs = [
        -jnp.abs(jax.random.normal(k1, (batch, prod_sizes[0]), dtype=jnp.float32)),
        -jnp.abs(jax.random.normal(k2, (batch, prod_sizes[1]), dtype=jnp.float32)),
    ]
    # Deterministic parameter init: nn.init.normal_(std=0.5) equivalent.
    params = 0.5 * jax.random.normal(k3, (num_inputs, num_sums), dtype=jnp.float32)

    out = jax.block_until_ready(sum_vector_forward(inputs, params))
    ref = sum_vector_reference(jnp.concatenate(inputs, axis=1), params)
    assert out.shape == (batch, num_sums)
    assert jnp.allclose(out, ref, atol=1e-5, rtol=1e-5), (
        f"max abs err {jnp.max(jnp.abs(out - ref))}"
    )

    # Larger batch: exercises the tiled transposed path (TB=128, grid=(3,), "parallel").
    batch2 = 384
    prods2 = -jnp.abs(jax.random.normal(k4, (batch2, num_inputs), dtype=jnp.float32))
    out2 = jax.block_until_ready(sum_vector_forward(prods2, params))
    ref2 = sum_vector_reference(prods2, params)
    assert out2.shape == (batch2, num_sums)
    assert jnp.allclose(out2, ref2, atol=1e-5, rtol=1e-5), (
        f"max abs err {jnp.max(jnp.abs(out2 - ref2))}"
    )

    # Large-S direct path with a non-divisible batch (partial last block via cdiv grid).
    batch3, num_sums3 = 200, 96
    prods3 = -jnp.abs(jax.random.normal(k5, (batch3, num_inputs), dtype=jnp.float32))
    params3 = 0.5 * jax.random.normal(k6, (num_inputs, num_sums3), dtype=jnp.float32)
    out3 = jax.block_until_ready(sum_vector_forward(prods3, params3))
    ref3 = sum_vector_reference(prods3, params3)
    assert out3.shape == (batch3, num_sums3)
    assert jnp.allclose(out3, ref3, atol=1e-5, rtol=1e-5), (
        f"max abs err {jnp.max(jnp.abs(out3 - ref3))}"
    )

    # TODO(synk): linear_sum_weights branch (log(exp(prods) @ softmax(params))) and the
    # get_child_acts=True return path are not exercised here (default-args path only).
    print("KERNEL_OK")
</pallas_src>

<mosaic_0001>
module attributes {stable_mosaic.version = 11 : i64} {
  func.func @sum_vector_kernel_t(%arg0: i32, %arg1: memref<32x8xf32, #tpu.memory_space<vmem>>, %arg2: memref<16x32xf32, #tpu.memory_space<vmem>>, %arg3: memref<16x8xf32, #tpu.memory_space<vmem>>) attributes {dimension_semantics = [#tpu.dimension_semantics<parallel>], iteration_bounds = array<i64: 1>, scalar_prefetch = 0 : i64, scratch_operands = 0 : i64, tpu.core_type = #tpu.core_type<tc>, window_params = [{transform_indices = @transform_0, window_bounds = array<i64: 32, 8>}, {pipeline_mode = #tpu.pipeline_mode<synchronous>, transform_indices = @transform_1, window_bounds = array<i64: 16, 32>}, {transform_indices = @transform_2, window_bounds = array<i64: 16, 8>}]} {
    %c0 = arith.constant 0 : index
    %c0_0 = arith.constant 0 : index
    %0 = vector.load %arg1[%c0, %c0_0] : memref<32x8xf32, #tpu.memory_space<vmem>>, vector<32x8xf32>
    %cst = arith.constant dense<0xFF800000> : vector<8xf32>
    %1 = vector.multi_reduction <maximumf>, %0, %cst [0] : vector<32x8xf32> to vector<8xf32>
    %2 = vector.shape_cast %1 : vector<8xf32> to vector<1x8xf32>
    %3 = tpu.weird %2 : vector<1x8xf32> -> vector<1x8xi1>
    %cst_1 = arith.constant dense<true> : vector<1x8xi1>
    %4 = arith.xori %3, %cst_1 : vector<1x8xi1>
    %cst_2 = arith.constant 0.000000e+00 : f32
    %5 = vector.broadcast %cst_2 : f32 to vector<1x8xf32>
    %6 = arith.select %4, %2, %5 : vector<1x8xi1>, vector<1x8xf32>
    %7 = vector.broadcast %6 : vector<1x8xf32> to vector<32x8xf32>
    %8 = arith.subf %0, %7 : vector<32x8xf32>
    %9 = math.exp %8 : vector<32x8xf32>
    %c0_3 = arith.constant 0 : index
    %c0_4 = arith.constant 0 : index
    %10 = vector.load %arg2[%c0_3, %c0_4] : memref<16x32xf32, #tpu.memory_space<vmem>>, vector<16x32xf32>
    %cst_5 = arith.constant dense<0.000000e+00> : vector<16x8xf32>
    %11 = tpu.matmul %10, %9, %cst_5 {dimension_numbers = #tpu.dot_dimension_numbers<[1], [0], [0], [1], [0, 0, 1, 1], [], []>, precision = #tpu.contract_precision<fp32>} : vector<16x32xf32>, vector<32x8xf32>, vector<16x8xf32> -> vector<16x8xf32>
    %12 = math.log %11 : vector<16x8xf32>
    %13 = vector.broadcast %2 : vector<1x8xf32> to vector<16x8xf32>
    %14 = arith.addf %13, %12 : vector<16x8xf32>
    %c0_6 = arith.constant 0 : index
    %c0_7 = arith.constant 0 : index
    %15 = vector.load %arg3[%c0_6, %c0_7] : memref<16x8xf32, #tpu.memory_space<vmem>>, vector<16x8xf32>
    tpu.vector_store %arg3[%c0_6, %c0_7], %14 {strides = array<i32>} : memref<16x8xf32, #tpu.memory_space<vmem>>, vector<16x8xf32>,
    return
  }
  func.func @transform_0(%arg0: i32) -> (i32, i32) {
    %c0_i32 = arith.constant 0 : i32
    %c0_i32_0 = arith.constant 0 : i32
    return %c0_i32, %arg0 : i32, i32
  }
  func.func @transform_1(%arg0: i32) -> (i32, i32) {
    %c0_i32 = arith.constant 0 : i32
    %c0_i32_0 = arith.constant 0 : i32
    %c0_i32_1 = arith.constant 0 : i32
    return %c0_i32, %c0_i32_0 : i32, i32
  }
  func.func @transform_2(%arg0: i32) -> (i32, i32) {
    %c0_i32 = arith.constant 0 : i32
    %c0_i32_0 = arith.constant 0 : i32
    return %c0_i32, %arg0 : i32, i32
  }
}

</mosaic_0001>

<llo_original>
// kernel: tpu_custom_call.1
$region0: #{tpu_custom_call.1}
  #allocation0 [shape = 'u32[]', space=smem, size = 0x4, offset = 0x4, fixed_abs, tag = 'smem constant byte address 0x4 - core index']
  #allocation1 [shape = 'u32[144,128]{1,0:T(1,128)}', space=vmem, size = 0x12000, scoped, tag = 'internal scratch']
  %s0 = inlined_call_operand.vmem [shape: f32[32,8], index: 0, kind: input, shape index: {}]
  %s1 = inlined_call_operand.vmem [shape: f32[16,32], index: 1, kind: input, shape index: {}]
  %s2 = inlined_call_operand.vmem [shape: f32[16,8], index: 2, kind: output, shape index: {}]
  %s3 = sld [smem:[#allocation0]]
  $region18: #{tpu_custom_call.1} parent=0
    _
  %s5 = ssub.s32 1, %s3
  %s6 = scalar_select 0, %s5, %s3
  // Predicated region
  $region2: #{tpu_custom_call.1} parent=0 // pred_check
    _
  $region3: #{tpu_custom_call.1} parent=0 // pred_check_branch
    %8 = sbr.rel (0) target = $region5
  $region4: #{tpu_custom_call.1} parent=0 // pred_region
    _
  $region5: #{tpu_custom_call.1} parent=0 // pred_fallthru
    _
  // Predicated region
  $region6: #{tpu_custom_call.1} parent=0 // pred_check
    _
  $region7: #{tpu_custom_call.1} parent=0 // pred_check_branch
    %10 = sbr.rel (0) target = $region9
  $region8: #{tpu_custom_call.1} parent=0 // pred_region
    _
  $region9: #{tpu_custom_call.1} parent=0 // pred_fallthru
    _
  %v11 = vld [vmem:[%s0] sm:$0xff]
  %v12 = vld [vmem:[%s0 + $0x8] sm:$0xff]
  %v13 = vld [vmem:[%s0 + $0x10] sm:$0xff]
  %v14 = vld [vmem:[%s0 + $0x18] sm:$0xff]
  %vm15 = vcmask 64512
  %v16 = vsel %vm15, %v11, -inf
  %v17 = vsel %vm15, %v12, -inf
  %v18 = vsel %vm15, %v13, -inf
  %v19 = vsel %vm15, %v14, -inf
  %v20 = vmax.f32 %v16, %v17
  %v21 = vmax.f32 %v18, %v19
  %v22 = vmax.f32 %v20, %v21
  %v23 = vrot.slane %v22, 4
  %v24 = vmax.f32 %v22, %v23
  %v25 = vrot.slane %v24, 2
  %v26 = vmax.f32 %v24, %v25
  %v27 = vrot.slane %v26, 1
  %v28 = vmax.f32 %v26, %v27
  %vm29 = vweird.f32 %v28
  %vm30 = vmxor %vm29, 1
  %v31 = vsel %vm30, %v28, 0.0
  %v32 = vsub.f32 %v11, %v31
  %v33 = vsub.f32 %v12, %v31
  %v34 = vsub.f32 %v13, %v31
  %v35 = vsub.f32 %v14, %v31
  %v36 = vmul.f32 %v32, 1.442695
  %v37 = vpow.pop %v36
  %v38 = vmul.f32 %v33, 1.442695
  %v39 = vpow.pop %v38
  %v40 = vmul.f32 %v34, 1.442695
  %v41 = vpow.pop %v40
  %v42 = vmul.f32 %v35, 1.442695
  %v43 = vpow.pop %v42
  %v44 = vld [vmem:[%s1] sm:$0xff]
  %v45 = vld [vmem:[%s1 + $0x8] sm:$0xff]
  %vm46 = vcmask 261120
  %v48 = vsel %vm46, %v44, 0
  %v51 = vsel %vm46, %v45, 0
  %53 = vmatprep.subr.mxu0 0.0
  %54 = vmatpush1.msra.mxu0 0.0
  %55 = vmatprep.subr.mxu0 0.0
  %56 = vmatpush1.msra.mxu0 0.0
  %57 = vmatprep.subr.mxu0 0.0
  %58 = vmatpush1.msra.mxu0 0.0
  %59 = vmatprep.subr.mxu0 0.0
  %60 = vmatpush1.msra.mxu0 0.0
  %61 = vmatprep.subr.mxu0 0.0
  %62 = vmatpush1.msra.mxu0 0.0
  %63 = vmatprep.subr.mxu0 0.0
  %64 = vmatpush1.msra.mxu0 0.0
  %65 = vmatprep.subr.mxu0 0.0
  %66 = vmatpush1.msra.mxu0 0.0
  %67 = vmatprep.subr.mxu0 0.0
  %68 = vmatpush1.msra.mxu0 0.0
  %69 = vmatprep.subr.mxu0 0.0
  %70 = vmatpush1.msra.mxu0 0.0
  %71 = vmatprep.subr.mxu0 0.0
  %72 = vmatpush1.msra.mxu0 0.0
  %73 = vmatprep.subr.mxu0 0.0
  %74 = vmatpush1.msra.mxu0 0.0
  %75 = vmatprep.subr.mxu0 0.0
  %76 = vmatpush1.msra.mxu0 0.0
  %77 = vmatprep.subr.mxu0 0.0
  %v78 = vand.u32 %v43, 4294901760
  %79 = vmatpush1.msra.mxu0 %v78
  %80 = vmatprep.subr.mxu0 0.0
  %v81 = vand.u32 %v41, 4294901760
  %82 = vmatpush1.msra.mxu0 %v81
  %83 = vmatprep.subr.mxu0 0.0
  %v84 = vand.u32 %v39, 4294901760
  %85 = vmatpush1.msra.mxu0 %v84
  %86 = vmatprep.subr.mxu0 0.0
  %v87 = vand.u32 %v37, 4294901760
  %88 = vmatpush1.msra.mxu0 %v87
  %89 = vmatprep.subr.mxu0 0.0
  %90 = vmatpush2.msra.mxu0 0.0
  %91 = vmatprep.subr.mxu0 0.0
  %92 = vmatpush2.msra.mxu0 0.0
  %93 = vmatprep.subr.mxu0 0.0
  %94 = vmatpush2.msra.mxu0 0.0
  %95 = vmatprep.subr.mxu0 0.0
  %96 = vmatpush2.msra.mxu0 0.0
  %97 = vmatprep.subr.mxu0 0.0
  %98 = vmatpush2.msra.mxu0 0.0
  %99 = vmatprep.subr.mxu0 0.0
  %100 = vmatpush2.msra.mxu0 0.0
  %101 = vmatprep.subr.mxu0 0.0
  %102 = vmatpush2.msra.mxu0 0.0
  %103 = vmatprep.subr.mxu0 0.0
  %104 = vmatpush2.msra.mxu0 0.0
  %105 = vmatprep.subr.mxu0 0.0
  %106 = vmatpush2.msra.mxu0 0.0
  %107 = vmatprep.subr.mxu0 0.0
  %108 = vmatpush2.msra.mxu0 0.0
  %109 = vmatprep.subr.mxu0 0.0
  %110 = vmatpush2.msra.mxu0 0.0
  %111 = vmatprep.subr.mxu0 0.0
  %112 = vmatpush2.msra.mxu0 0.0
  %113 = vmatprep.subr.mxu0 0.0
  %114 = vmatpush2.msra.mxu0 0.0
  %115 = vmatprep.subr.mxu0 0.0
  %116 = vmatpush2.msra.mxu0 0.0
  %117 = vmatprep.subr.mxu0 0.0
  %118 = vmatpush2.msra.mxu0 0.0
  %119 = vmatprep.subr.mxu0 0.0
  %120 = vmatpush2.msra.mxu0 0.0
  %121 = vmatprep.mubr.f32.mxu0 0.0
  %v122 = vand.u32 %v48, 4294901760
  %v123 = vsub.f32 %v48, %v122
  %v124 = vand.u32 %v123, 4294901760
  %v125 = vsub.f32 %v123, %v124
  %v126 = vand.u32 %v125, 4294901760
  %127 = vmatmul.mubr.f32.gmra.mxu0 %v126
  %v128 = vpop.f32.mrf.mxu0
  %v129 = vadd.f32 0.0, %v128
  %v130 = vpop.f32.mrf.mxu0
  %131 = vmatprep.mubr.f32.mxu0 0.0
  %v132 = vand.u32 %v51, 4294901760
  %v133 = vsub.f32 %v51, %v132
  %v134 = vand.u32 %v133, 4294901760
  %v135 = vsub.f32 %v133, %v134
  %v136 = vand.u32 %v135, 4294901760
  %137 = vmatmul.mubr.f32.gmra.mxu0 %v136
  %v138 = vpop.f32.mrf.mxu0
  %v139 = vadd.f32 0.0, %v138
  %v140 = vpop.f32.mrf.mxu0
  %141 = vdwg.mxu0
  %142 = vmatprep.subr.mxu0 0.0
  %143 = vmatpush1.msra.mxu0 0.0
  %144 = vmatprep.subr.mxu0 0.0
  %145 = vmatpush1.msra.mxu0 0.0
  %146 = vmatprep.subr.mxu0 0.0
  %147 = vmatpush1.msra.mxu0 0.0
  %148 = vmatprep.subr.mxu0 0.0
  %149 = vmatpush1.msra.mxu0 0.0
  %150 = vmatprep.subr.mxu0 0.0
  %151 = vmatpush1.msra.mxu0 0.0
  %152 = vmatprep.subr.mxu0 0.0
  %153 = vmatpush1.msra.mxu0 0.0
  %154 = vmatprep.subr.mxu0 0.0
  %155 = vmatpush1.msra.mxu0 0.0
  %156 = vmatprep.subr.mxu0 0.0
  %157 = vmatpush1.msra.mxu0 0.0
  %158 = vmatprep.subr.mxu0 0.0
  %159 = vmatpush1.msra.mxu0 0.0
  %160 = vmatprep.subr.mxu0 0.0
  %161 = vmatpush1.msra.mxu0 0.0
  %162 = vmatprep.subr.mxu0 0.0
  %163 = vmatpush1.msra.mxu0 0.0
  %164 = vmatprep.subr.mxu0 0.0
  %165 = vmatpush1.msra.mxu0 0.0
  %166 = vmatprep.subr.mxu0 0.0
  %v167 = vand.u32 %v43, 4294901760
  %v168 = vsub.f32 %v43, %v167
  %v169 = vand.u32 %v168, 4294901760
  %v170 = vsub.f32 %v168, %v169
  %v171 = vand.u32 %v170, 4294901760
  %172 = vmatpush1.msra.mxu0 %v171
  %173 = vmatprep.subr.mxu0 0.0
  %v174 = vand.u32 %v41, 4294901760
  %v175 = vsub.f32 %v41, %v174
  %v176 = vand.u32 %v175, 4294901760
  %v177 = vsub.f32 %v175, %v176
  %v178 = vand.u32 %v177, 4294901760
  %179 = vmatpush1.msra.mxu0 %v178
  %180 = vmatprep.subr.mxu0 0.0
  %v181 = vand.u32 %v39, 4294901760
  %v182 = vsub.f32 %v39, %v181
  %v183 = vand.u32 %v182, 4294901760
  %v184 = vsub.f32 %v182, %v183
  %v185 = vand.u32 %v184, 4294901760
  %186 = vmatpush1.msra.mxu0 %v185
  %187 = vmatprep.subr.mxu0 0.0
  %v188 = vand.u32 %v37, 4294901760
  %v189 = vsub.f32 %v37, %v188
  %v190 = vand.u32 %v189, 4294901760
  %v191 = vsub.f32 %v189, %v190
  %v192 = vand.u32 %v191, 4294901760
  %193 = vmatpush1.msra.mxu0 %v192
  %194 = vmatprep.subr.mxu0 0.0
  %195 = vmatpush2.msra.mxu0 0.0
  %196 = vmatprep.subr.mxu0 0.0
  %197 = vmatpush2.msra.mxu0 0.0
  %198 = vmatprep.subr.mxu0 0.0
  %199 = vmatpush2.msra.mxu0 0.0
  %200 = vmatprep.subr.mxu0 0.0
  %201 = vmatpush2.msra.mxu0 0.0
  %202 = vmatprep.subr.mxu0 0.0
  %203 = vmatpush2.msra.mxu0 0.0
  %204 = vmatprep.subr.mxu0 0.0
  %205 = vmatpush2.msra.mxu0 0.0
  %206 = vmatprep.subr.mxu0 0.0
  %207 = vmatpush2.msra.mxu0 0.0
  %208 = vmatprep.subr.mxu0 0.0
  %209 = vmatpush2.msra.mxu0 0.0
  %210 = vmatprep.subr.mxu0 0.0
  %211 = vmatpush2.msra.mxu0 0.0
  %212 = vmatprep.subr.mxu0 0.0
  %213 = vmatpush2.msra.mxu0 0.0
  %214 = vmatprep.subr.mxu0 0.0
  %215 = vmatpush2.msra.mxu0 0.0
  %216 = vmatprep.subr.mxu0 0.0
  %217 = vmatpush2.msra.mxu0 0.0
  %218 = vmatprep.subr.mxu0 0.0
  %219 = vmatpush2.msra.mxu0 0.0
  %220 = vmatprep.subr.mxu0 0.0
  %221 = vmatpush2.msra.mxu0 0.0
  %222 = vmatprep.subr.mxu0 0.0
  %223 = vmatpush2.msra.mxu0 0.0
  %224 = vmatprep.subr.mxu0 0.0
  %225 = vmatpush2.msra.mxu0 0.0
  %226 = vmatprep.mubr.f32.mxu0 0.0
  %v227 = vand.u32 %v48, 4294901760
  %228 = vmatmul.mubr.f32.gmra.mxu0 %v227
  %v229 = vpop.f32.mrf.mxu0
  %v230 = vadd.f32 %v129, %v229
  %v231 = vpop.f32.mrf.mxu0
  %232 = vmatprep.mubr.f32.mxu0 0.0
  %v233 = vand.u32 %v51, 4294901760
  %234 = vmatmul.mubr.f32.gmra.mxu0 %v233
  %v235 = vpop.f32.mrf.mxu0
  %v236 = vadd.f32 %v139, %v235
  %v237 = vpop.f32.mrf.mxu0
  %238 = vdwg.mxu0
  %239 = vmatprep.subr.mxu0 0.0
  %240 = vmatpush1.msra.mxu0 0.0
  %241 = vmatprep.subr.mxu0 0.0
  %242 = vmatpush1.msra.mxu0 0.0
  %243 = vmatprep.subr.mxu0 0.0
  %244 = vmatpush1.msra.mxu0 0.0
  %245 = vmatprep.subr.mxu0 0.0
  %246 = vmatpush1.msra.mxu0 0.0
  %247 = vmatprep.subr.mxu0 0.0
  %248 = vmatpush1.msra.mxu0 0.0
  %249 = vmatprep.subr.mxu0 0.0
  %250 = vmatpush1.msra.mxu0 0.0
  %251 = vmatprep.subr.mxu0 0.0
  %252 = vmatpush1.msra.mxu0 0.0
  %253 = vmatprep.subr.mxu0 0.0
  %254 = vmatpush1.msra.mxu0 0.0
  %255 = vmatprep.subr.mxu0 0.0
  %256 = vmatpush1.msra.mxu0 0.0
  %257 = vmatprep.subr.mxu0 0.0
  %258 = vmatpush1.msra.mxu0 0.0
  %259 = vmatprep.subr.mxu0 0.0
  %260 = vmatpush1.msra.mxu0 0.0
  %261 = vmatprep.subr.mxu0 0.0
  %262 = vmatpush1.msra.mxu0 0.0
  %263 = vmatprep.subr.mxu0 0.0
  %v264 = vand.u32 %v43, 4294901760
  %v265 = vsub.f32 %v43, %v264
  %266 = vmatpush1.msra.mxu0 %v265
  %267 = vmatprep.subr.mxu0 0.0
  %v268 = vand.u32 %v41, 4294901760
  %v269 = vsub.f32 %v41, %v268
  %270 = vmatpush1.msra.mxu0 %v269
  %271 = vmatprep.subr.mxu0 0.0
  %v272 = vand.u32 %v39, 4294901760
  %v273 = vsub.f32 %v39, %v272
  %274 = vmatpush1.msra.mxu0 %v273
  %275 = vmatprep.subr.mxu0 0.0
  %v276 = vand.u32 %v37, 4294901760
  %v277 = vsub.f32 %v37, %v276
  %278 = vmatpush1.msra.mxu0 %v277
  %279 = vmatprep.subr.mxu0 0.0
  %280 = vmatpush2.msra.mxu0 0.0
  %281 = vmatprep.subr.mxu0 0.0
  %282 = vmatpush2.msra.mxu0 0.0
  %283 = vmatprep.subr.mxu0 0.0
  %284 = vmatpush2.msra.mxu0 0.0
  %285 = vmatprep.subr.mxu0 0.0
  %286 = vmatpush2.msra.mxu0 0.0
  %287 = vmatprep.subr.mxu0 0.0
  %288 = vmatpush2.msra.mxu0 0.0
  %289 = vmatprep.subr.mxu0 0.0
  %290 = vmatpush2.msra.mxu0 0.0
  %291 = vmatprep.subr.mxu0 0.0
  %292 = vmatpush2.msra.mxu0 0.0
  %293 = vmatprep.subr.mxu0 0.0
  %294 = vmatpush2.msra.mxu0 0.0
  %295 = vmatprep.subr.mxu0 0.0
  %296 = vmatpush2.msra.mxu0 0.0
  %297 = vmatprep.subr.mxu0 0.0
  %298 = vmatpush2.msra.mxu0 0.0
  %299 = vmatprep.subr.mxu0 0.0
  %300 = vmatpush2.msra.mxu0 0.0
  %301 = vmatprep.subr.mxu0 0.0
  %302 = vmatpush2.msra.mxu0 0.0
  %303 = vmatprep.subr.mxu0 0.0
  %304 = vmatpush2.msra.mxu0 0.0
  %305 = vmatprep.subr.mxu0 0.0
  %306 = vmatpush2.msra.mxu0 0.0
  %307 = vmatprep.subr.mxu0 0.0
  %308 = vmatpush2.msra.mxu0 0.0
  %309 = vmatprep.subr.mxu0 0.0
  %310 = vmatpush2.msra.mxu0 0.0
  %311 = vmatprep.mubr.f32.mxu0 0.0
  %v312 = vand.u32 %v48, 4294901760
  %v313 = vsub.f32 %v48, %v312
  %314 = vmatmul.mubr.f32.gmra.mxu0 %v313
  %v315 = vpop.f32.mrf.mxu0
  %v316 = vadd.f32 %v230, %v315
  %v317 = vpop.f32.mrf.mxu0
  %318 = vmatprep.mubr.f32.mxu0 0.0
  %v319 = vand.u32 %v51, 4294901760
  %v320 = vsub.f32 %v51, %v319
  %321 = vmatmul.mubr.f32.gmra.mxu0 %v320
  %v322 = vpop.f32.mrf.mxu0
  %v323 = vadd.f32 %v236, %v322
  %v324 = vpop.f32.mrf.mxu0
  %325 = vdwg.mxu0
  %326 = vmatprep.subr.mxu0 0.0
  %327 = vmatpush1.msra.mxu0 0.0
  %328 = vmatprep.subr.mxu0 0.0
  %329 = vmatpush1.msra.mxu0 0.0
  %330 = vmatprep.subr.mxu0 0.0
  %331 = vmatpush1.msra.mxu0 0.0
  %332 = vmatprep.subr.mxu0 0.0
  %333 = vmatpush1.msra.mxu0 0.0
  %334 = vmatprep.subr.mxu0 0.0
  %335 = vmatpush1.msra.mxu0 0.0
  %336 = vmatprep.subr.mxu0 0.0
  %337 = vmatpush1.msra.mxu0 0.0
  %338 = vmatprep.subr.mxu0 0.0
  %339 = vmatpush1.msra.mxu0 0.0
  %340 = vmatprep.subr.mxu0 0.0
  %341 = vmatpush1.msra.mxu0 0.0
  %342 = vmatprep.subr.mxu0 0.0
  %343 = vmatpush1.msra.mxu0 0.0
  %344 = vmatprep.subr.mxu0 0.0
  %345 = vmatpush1.msra.mxu0 0.0
  %346 = vmatprep.subr.mxu0 0.0
  %347 = vmatpush1.msra.mxu0 0.0
  %348 = vmatprep.subr.mxu0 0.0
  %349 = vmatpush1.msra.mxu0 0.0
  %350 = vmatprep.subr.mxu0 0.0
  %v351 = vand.u32 %v43, 4294901760
  %352 = vmatpush1.msra.mxu0 %v351
  %353 = vmatprep.subr.mxu0 0.0
  %v354 = vand.u32 %v41, 4294901760
  %355 = vmatpush1.msra.mxu0 %v354
  %356 = vmatprep.subr.mxu0 0.0
  %v357 = vand.u32 %v39, 4294901760
  %358 = vmatpush1.msra.mxu0 %v357
  %359 = vmatprep.subr.mxu0 0.0
  %v360 = vand.u32 %v37, 4294901760
  %361 = vmatpush1.msra.mxu0 %v360
  %362 = vmatprep.subr.mxu0 0.0
  %363 = vmatpush2.msra.mxu0 0.0
  %364 = vmatprep.subr.mxu0 0.0
  %365 = vmatpush2.msra.mxu0 0.0
  %366 = vmatprep.subr.mxu0 0.0
  %367 = vmatpush2.msra.mxu0 0.0
  %368 = vmatprep.subr.mxu0 0.0
  %369 = vmatpush2.msra.mxu0 0.0
  %370 = vmatprep.subr.mxu0 0.0
  %371 = vmatpush2.msra.mxu0 0.0
  %372 = vmatprep.subr.mxu0 0.0
  %373 = vmatpush2.msra.mxu0 0.0
  %374 = vmatprep.subr.mxu0 0.0
  %375 = vmatpush2.msra.mxu0 0.0
  %376 = vmatprep.subr.mxu0 0.0
  %377 = vmatpush2.msra.mxu0 0.0
  %378 = vmatprep.subr.mxu0 0.0
  %379 = vmatpush2.msra.mxu0 0.0
  %380 = vmatprep.subr.mxu0 0.0
  %381 = vmatpush2.msra.mxu0 0.0
  %382 = vmatprep.subr.mxu0 0.0
  %383 = vmatpush2.msra.mxu0 0.0
  %384 = vmatprep.subr.mxu0 0.0
  %385 = vmatpush2.msra.mxu0 0.0
  %386 = vmatprep.subr.mxu0 0.0
  %387 = vmatpush2.msra.mxu0 0.0
  %388 = vmatprep.subr.mxu0 0.0
  %389 = vmatpush2.msra.mxu0 0.0
  %390 = vmatprep.subr.mxu0 0.0
  %391 = vmatpush2.msra.mxu0 0.0
  %392 = vmatprep.subr.mxu0 0.0
  %393 = vmatpush2.msra.mxu0 0.0
  %394 = vmatprep.mubr.f32.mxu0 0.0
  %v395 = vand.u32 %v48, 4294901760
  %v396 = vsub.f32 %v48, %v395
  %v397 = vand.u32 %v396, 4294901760
  %398 = vmatmul.mubr.f32.gmra.mxu0 %v397
  %v399 = vpop.f32.mrf.mxu0
  %v400 = vadd.f32 %v316, %v399
  %v401 = vpop.f32.mrf.mxu0
  %402 = vmatprep.mubr.f32.mxu0 0.0
  %v403 = vand.u32 %v51, 4294901760
  %v404 = vsub.f32 %v51, %v403
  %v405 = vand.u32 %v404, 4294901760
  %406 = vmatmul.mubr.f32.gmra.mxu0 %v405
  %v407 = vpop.f32.mrf.mxu0
  %v408 = vadd.f32 %v323, %v407
  %v409 = vpop.f32.mrf.mxu0
  %410 = vdwg.mxu0
  %411 = vmatprep.subr.mxu0 0.0
  %412 = vmatpush1.msra.mxu0 0.0
  %413 = vmatprep.subr.mxu0 0.0
  %414 = vmatpush1.msra.mxu0 0.0
  %415 = vmatprep.subr.mxu0 0.0
  %416 = vmatpush1.msra.mxu0 0.0
  %417 = vmatprep.subr.mxu0 0.0
  %418 = vmatpush1.msra.mxu0 0.0
  %419 = vmatprep.subr.mxu0 0.0
  %420 = vmatpush1.msra.mxu0 0.0
  %421 = vmatprep.subr.mxu0 0.0
  %422 = vmatpush1.msra.mxu0 0.0
  %423 = vmatprep.subr.mxu0 0.0
  %424 = vmatpush1.msra.mxu0 0.0
  %425 = vmatprep.subr.mxu0 0.0
  %426 = vmatpush1.msra.mxu0 0.0
  %427 = vmatprep.subr.mxu0 0.0
  %428 = vmatpush1.msra.mxu0 0.0
  %429 = vmatprep.subr.mxu0 0.0
  %430 = vmatpush1.msra.mxu0 0.0
  %431 = vmatprep.subr.mxu0 0.0
  %432 = vmatpush1.msra.mxu0 0.0
  %433 = vmatprep.subr.mxu0 0.0
  %434 = vmatpush1.msra.mxu0 0.0
  %435 = vmatprep.subr.mxu0 0.0
  %v436 = vand.u32 %v43, 4294901760
  %v437 = vsub.f32 %v43, %v436
  %v438 = vand.u32 %v437, 4294901760
  %439 = vmatpush1.msra.mxu0 %v438
  %440 = vmatprep.subr.mxu0 0.0
  %v441 = vand.u32 %v41, 4294901760
  %v442 = vsub.f32 %v41, %v441
  %v443 = vand.u32 %v442, 4294901760
  %444 = vmatpush1.msra.mxu0 %v443
  %445 = vmatprep.subr.mxu0 0.0
  %v446 = vand.u32 %v39, 4294901760
  %v447 = vsub.f32 %v39, %v446
  %v448 = vand.u32 %v447, 4294901760
  %449 = vmatpush1.msra.mxu0 %v448
  %450 = vmatprep.subr.mxu0 0.0
  %v451 = vand.u32 %v37, 4294901760
  %v452 = vsub.f32 %v37, %v451
  %v453 = vand.u32 %v452, 4294901760
  %454 = vmatpush1.msra.mxu0 %v453
  %455 = vmatprep.subr.mxu0 0.0
  %456 = vmatpush2.msra.mxu0 0.0
  %457 = vmatprep.subr.mxu0 0.0
  %458 = vmatpush2.msra.mxu0 0.0
  %459 = vmatprep.subr.mxu0 0.0
  %460 = vmatpush2.msra.mxu0 0.0
  %461 = vmatprep.subr.mxu0 0.0
  %462 = vmatpush2.msra.mxu0 0.0
  %463 = vmatprep.subr.mxu0 0.0
  %464 = vmatpush2.msra.mxu0 0.0
  %465 = vmatprep.subr.mxu0 0.0
  %466 = vmatpush2.msra.mxu0 0.0
  %467 = vmatprep.subr.mxu0 0.0
  %468 = vmatpush2.msra.mxu0 0.0
  %469 = vmatprep.subr.mxu0 0.0
  %470 = vmatpush2.msra.mxu0 0.0
  %471 = vmatprep.subr.mxu0 0.0
  %472 = vmatpush2.msra.mxu0 0.0
  %473 = vmatprep.subr.mxu0 0.0
  %474 = vmatpush2.msra.mxu0 0.0
  %475 = vmatprep.subr.mxu0 0.0
  %476 = vmatpush2.msra.mxu0 0.0
  %477 = vmatprep.subr.mxu0 0.0
  %478 = vmatpush2.msra.mxu0 0.0
  %479 = vmatprep.subr.mxu0 0.0
  %480 = vmatpush2.msra.mxu0 0.0
  %481 = vmatprep.subr.mxu0 0.0
  %482 = vmatpush2.msra.mxu0 0.0
  %483 = vmatprep.subr.mxu0 0.0
  %484 = vmatpush2.msra.mxu0 0.0
  %485 = vmatprep.subr.mxu0 0.0
  %486 = vmatpush2.msra.mxu0 0.0
  %487 = vmatprep.mubr.f32.mxu0 0.0
  %v488 = vand.u32 %v48, 4294901760
  %489 = vmatmul.mubr.f32.gmra.mxu0 %v488
  %v490 = vpop.f32.mrf.mxu0
  %v491 = vadd.f32 %v400, %v490
  %v492 = vpop.f32.mrf.mxu0
  %493 = vmatprep.mubr.f32.mxu0 0.0
  %v494 = vand.u32 %v51, 4294901760
  %495 = vmatmul.mubr.f32.gmra.mxu0 %v494
  %v496 = vpop.f32.mrf.mxu0
  %v497 = vadd.f32 %v408, %v496
  %v498 = vpop.f32.mrf.mxu0
  %499 = vdwg.mxu0
  %500 = vmatprep.subr.mxu0 0.0
  %501 = vmatpush1.msra.mxu0 0.0
  %502 = vmatprep.subr.mxu0 0.0
  %503 = vmatpush1.msra.mxu0 0.0
  %504 = vmatprep.subr.mxu0 0.0
  %505 = vmatpush1.msra.mxu0 0.0
  %506 = vmatprep.subr.mxu0 0.0
  %507 = vmatpush1.msra.mxu0 0.0
  %508 = vmatprep.subr.mxu0 0.0
  %509 = vmatpush1.msra.mxu0 0.0
  %510 = vmatprep.subr.mxu0 0.0
  %511 = vmatpush1.msra.mxu0 0.0
  %512 = vmatprep.subr.mxu0 0.0
  %513 = vmatpush1.msra.mxu0 0.0
  %514 = vmatprep.subr.mxu0 0.0
  %515 = vmatpush1.msra.mxu0 0.0
  %516 = vmatprep.subr.mxu0 0.0
  %517 = vmatpush1.msra.mxu0 0.0
  %518 = vmatprep.subr.mxu0 0.0
  %519 = vmatpush1.msra.mxu0 0.0
  %520 = vmatprep.subr.mxu0 0.0
  %521 = vmatpush1.msra.mxu0 0.0
  %522 = vmatprep.subr.mxu0 0.0
  %523 = vmatpush1.msra.mxu0 0.0
  %524 = vmatprep.subr.mxu0 0.0
  %v525 = vand.u32 %v43, 4294901760
  %526 = vmatpush1.msra.mxu0 %v525
  %527 = vmatprep.subr.mxu0 0.0
  %v528 = vand.u32 %v41, 4294901760
  %529 = vmatpush1.msra.mxu0 %v528
  %530 = vmatprep.subr.mxu0 0.0
  %v531 = vand.u32 %v39, 4294901760
  %532 = vmatpush1.msra.mxu0 %v531
  %533 = vmatprep.subr.mxu0 0.0
  %v534 = vand.u32 %v37, 4294901760
  %535 = vmatpush1.msra.mxu0 %v534
  %536 = vmatprep.subr.mxu0 0.0
  %537 = vmatpush2.msra.mxu0 0.0
  %538 = vmatprep.subr.mxu0 0.0
  %539 = vmatpush2.msra.mxu0 0.0
  %540 = vmatprep.subr.mxu0 0.0
  %541 = vmatpush2.msra.mxu0 0.0
  %542 = vmatprep.subr.mxu0 0.0
  %543 = vmatpush2.msra.mxu0 0.0
  %544 = vmatprep.subr.mxu0 0.0
  %545 = vmatpush2.msra.mxu0 0.0
  %546 = vmatprep.subr.mxu0 0.0
  %547 = vmatpush2.msra.mxu0 0.0
  %548 = vmatprep.subr.mxu0 0.0
  %549 = vmatpush2.msra.mxu0 0.0
  %550 = vmatprep.subr.mxu0 0.0
  %551 = vmatpush2.msra.mxu0 0.0
  %552 = vmatprep.subr.mxu0 0.0
  %553 = vmatpush2.msra.mxu0 0.0
  %554 = vmatprep.subr.mxu0 0.0
  %555 = vmatpush2.msra.mxu0 0.0
  %556 = vmatprep.subr.mxu0 0.0
  %557 = vmatpush2.msra.mxu0 0.0
  %558 = vmatprep.subr.mxu0 0.0
  %559 = vmatpush2.msra.mxu0 0.0
  %560 = vmatprep.subr.mxu0 0.0
  %561 = vmatpush2.msra.mxu0 0.0
  %562 = vmatprep.subr.mxu0 0.0
  %563 = vmatpush2.msra.mxu0 0.0
  %564 = vmatprep.subr.mxu0 0.0
  %565 = vmatpush2.msra.mxu0 0.0
  %566 = vmatprep.subr.mxu0 0.0
  %567 = vmatpush2.msra.mxu0 0.0
  %568 = vmatprep.mubr.f32.mxu0 0.0
  %v569 = vand.u32 %v48, 4294901760
  %570 = vmatmul.mubr.f32.gmra.mxu0 %v569
  %v571 = vpop.f32.mrf.mxu0
  %v572 = vadd.f32 %v491, %v571
  %v573 = vpop.f32.mrf.mxu0
  %574 = vmatprep.mubr.f32.mxu0 0.0
  %v575 = vand.u32 %v51, 4294901760
  %576 = vmatmul.mubr.f32.gmra.mxu0 %v575
  %v577 = vpop.f32.mrf.mxu0
  %v578 = vadd.f32 %v497, %v577
  %v579 = vpop.f32.mrf.mxu0
  %580 = vdwg.mxu0
  %v581 = vlog2.pop %v572
  %v582 = vmul.f32 %v581, 0.6931472
  %v583 = vlog2.pop %v578
  %v584 = vmul.f32 %v583, 0.6931472
  %v585 = vadd.f32 %v28, %v582
  %v586 = vadd.f32 %v28, %v584
  %587 = vst.msk [vmem:[%s2] sm:$0xff] %vm15, %v585
  %588 = vst.msk [vmem:[%s2 + $0x8] sm:$0xff] %vm15, %v586
  // Predicated region
  $region10: #{tpu_custom_call.1} parent=0 // pred_check
    _
  $region11: #{tpu_custom_call.1} parent=0 // pred_check_branch
    %590 = sbr.rel (0) target = $region13
  $region12: #{tpu_custom_call.1} parent=0 // pred_region
    _
  $region13: #{tpu_custom_call.1} parent=0 // pred_fallthru
    _
  // Predicated region
  $region14: #{tpu_custom_call.1} parent=0 // pred_check
    _
  $region15: #{tpu_custom_call.1} parent=0 // pred_check_branch
    %592 = sbr.rel (0) target = $region17
  $region16: #{tpu_custom_call.1} parent=0 // pred_region
    _
  $region17: #{tpu_custom_call.1} parent=0 // pred_fallthru
    _

</llo_original>
